<compile_context>
chip_gen: v7x
topology: tpu7x:2x2x1
jax: 0.10.0
libtpu: 0.0.40
codegen_flags: <defaults>
</compile_context>

<pallas_src>
import functools

import numpy as np
import jax
import jax.numpy as jnp
from jax import lax
from jax.experimental import pallas as pl
from jax.experimental.pallas import tpu as pltpu

NEG_SLOPE = 0.01   # nn.LeakyReLU default negative_slope
EPS = 1e-5         # BatchNorm2d / InstanceNorm2d default eps
SP = 4             # Selector.spatial_attention
K_SIZE = 3
PAD = 1


# ----------------------------- Pallas kernels -----------------------------

def stats_kernel(x_ref, mean_ref, meansq_ref):
    """Per-row mean and mean-of-squares over the (b, c) rows of x (B*C, H*W)."""
    xv = x_ref[...]
    mean_ref[...] = jnp.mean(xv, axis=1, keepdims=True)
    meansq_ref[...] = jnp.mean(xv * xv, axis=1, keepdims=True)


def skconv_kernel(x_ref, bn_scale_ref, bn_bias_ref, in_scale_ref, in_bias_ref,
                  colmask_ref, wbig_ref, bb_ref,
                  pbig_ref, dmask_ref, wfc_ref, watt_ref, batt_ref, ubig_ref,
                  o_ref, pad_s, tap_s,
                  *, H, W, Cin, Cout, padl, apply_norm):
    """Fused norm+act -> (conv1|conv2 as one matmul) -> Selector -> blend, one image."""
    HW = H * W
    Cfull = Cout * SP * SP

    x = x_ref[0]                                   # (Cin, HW)

    if apply_norm:
        f = x * bn_scale_ref[...] + bn_bias_ref[...]          # BatchNorm (batch stats)
        f = jnp.maximum(f, NEG_SLOPE * f)                     # LeakyReLU
        s = x * in_scale_ref[0] + in_bias_ref[0]              # InstanceNorm
        s = jnp.maximum(s, NEG_SLOPE * s)
    else:
        f = x
        s = x

    # Zero-padded [f ; s] rows in VMEM (interior at a lane-aligned offset `padl`).
    pad_s[...] = jnp.zeros_like(pad_s)
    pad_s[0:Cin, padl:padl + HW] = f
    pad_s[Cin:2 * Cin, padl:padl + HW] = s

    cm = colmask_ref[...]                          # (2, HW)
    mask_l = cm[0:1, :]                            # valid columns for dw == -1
    mask_r = cm[1:2, :]                            # valid columns for dw == +1

    # Build the tap stack: rows [2*Cin*k, 2*Cin*(k+1)) hold tap k of [f ; s].
    k = 0
    for dh in (-1, 0, 1):
        for dw in (-1, 0, 1):
            start = padl + dh * W + dw             # offset of the shifted window
            win = pad_s[:, start:start + HW]       # (2*Cin, HW)
            if dw == -1:
                win = win * mask_l
            elif dw == 1:
                win = win * mask_r
            tap_s[2 * Cin * k:2 * Cin * (k + 1), :] = win
            k += 1

    # Both 3x3 convs as ONE matmul with a block-diagonal weight.
    out12 = jnp.dot(wbig_ref[...], tap_s[...],
                    preferred_element_type=jnp.float32) + bb_ref[...]   # (2*Cout, HW)
    out1 = out12[0:Cout, :]
    out2 = out12[Cout:2 * Cout, :]

    # --- Selector -----------------------------------------------------------
    dmask = dmask_ref[...]                         # (Cout, Cfull) block-diagonal mask
    # adaptive 4x4 avg-pool + channel-major flatten, without any reshape:
    # big[c, c'*16+p] = pooled[c, p]; masking + sublane-sum picks the diagonal.
    big = jnp.dot(out1 + out2, pbig_ref[...],
                  preferred_element_type=jnp.float32)                   # (Cout, Cfull)
    pooled_flat = jnp.sum(big * dmask, axis=0, keepdims=True)           # (1, Cfull)

    h = jnp.maximum(jnp.dot(pooled_flat, wfc_ref[...],
                            preferred_element_type=jnp.float32), 0.0)   # (1, hidden)

    # both attention logits in one dot
    a = jnp.dot(h, watt_ref[...], preferred_element_type=jnp.float32) + batt_ref[...]
    a1 = a[:, 0:Cfull]
    a2 = a[:, Cfull:2 * Cfull]
    m = jnp.maximum(a1, a2)
    e1 = jnp.exp(a1 - m)
    e2 = jnp.exp(a2 - m)
    att1 = e1 * pl.reciprocal(e1 + e2, approx=True)                     # (1, Cfull); att2 = 1 - att1

    # nearest upsample of att1 to (Cout, HW) as one matmul (mask keeps each
    # channel's own 16 attention cells), then the blend as one full-block store.
    att_rows = att1 * dmask                                             # (Cout, Cfull)
    up1 = jnp.dot(att_rows, ubig_ref[...],
                  preferred_element_type=jnp.float32)                   # (Cout, HW)
    o_ref[0] = (out2 + (out1 - out2) * up1).astype(o_ref.dtype)


# ------------------------------- wrappers ---------------------------------

def row_stats(x2):
    """Per-row mean / mean-of-squares of a (R, HW) matrix via a tiled Pallas kernel."""
    R, HW = x2.shape
    if R % 8 == 0:
        # as many rows per step as comfortably fit VMEM (~4 MiB of input per block)
        budget_rows = max(8, min(R, (4 * 1024 * 1024) // max(HW * 4, 1)))
        RB = max(8, (budget_rows // 8) * 8)
        while R % RB != 0:
            RB -= 8
    else:
        RB = R
    grid = (R // RB,)
    mean, meansq = pl.pallas_call(
        stats_kernel,
        grid=grid,
        in_specs=[pl.BlockSpec((RB, HW), lambda i: (i, 0))],
        out_specs=(pl.BlockSpec((RB, 1), lambda i: (i, 0)),
                   pl.BlockSpec((RB, 1), lambda i: (i, 0))),
        out_shape=(jax.ShapeDtypeStruct((R, 1), jnp.float32),
                   jax.ShapeDtypeStruct((R, 1), jnp.float32)),
        compiler_params=pltpu.CompilerParams(dimension_semantics=("parallel",)),
    )(x2)
    return mean, meansq


def sk_down_forward(x, params, first=False):
    B, Cin, H, W = x.shape
    # TODO(synk): PyTorch AdaptiveAvgPool2d uses variable windows when H or W is
    # not divisible by 4; only the uniform-cell case is implemented here.
    assert H % SP == 0 and W % SP == 0
    HW = H * W
    K2 = K_SIZE * K_SIZE
    Cout = params["conv1_w"].shape[0]
    hidden = params["fc_w"].shape[0]
    SPc = SP * SP
    Cfull = Cout * SPc
    PADL = ((W + 1 + 127) // 128) * 128            # lane-aligned pad for the scratch
    HWP = HW + 2 * PADL

    x_flat = x.reshape(B, Cin, HW)                 # free view, no transpose / no pad

    if first:
        bn_scale = jnp.ones((Cin, 1), jnp.float32)
        bn_bias = jnp.zeros((Cin, 1), jnp.float32)
        in_scale = jnp.ones((B, Cin, 1), jnp.float32)
        in_bias = jnp.zeros((B, Cin, 1), jnp.float32)
    else:
        mean, meansq = row_stats(x_flat.reshape(B * Cin, HW))
        mean = mean.reshape(B, Cin)
        meansq = meansq.reshape(B, Cin)
        # InstanceNorm stats (per b, c)
        var_in = meansq - mean * mean
        in_scale = lax.rsqrt(var_in + EPS)
        in_bias = -mean * in_scale
        # BatchNorm (training) stats (per c, over b, h, w)
        mean_c = mean.mean(axis=0)
        var_bn = meansq.mean(axis=0) - mean_c * mean_c
        bn_scale_c = lax.rsqrt(var_bn + EPS)
        bn_bias_c = -mean_c * bn_scale_c
        bn_scale = bn_scale_c.reshape(Cin, 1)
        bn_bias = bn_bias_c.reshape(Cin, 1)
        in_scale = in_scale.reshape(B, Cin, 1)
        in_bias = in_bias.reshape(B, Cin, 1)

    # small host-built constants -------------------------------------------------
    cols = np.arange(HW) % W
    rows = np.arange(HW) // W
    colmask = np.ones((2, HW), np.float32)
    colmask[0, cols == 0] = 0.0                    # tap shifted left  (dw == -1)
    colmask[1, cols == W - 1] = 0.0                # tap shifted right (dw == +1)
    cell = (rows // (H // SP)) * SP + (cols // (W // SP))       # 4x4 pool cell id
    ppool = (cell[:, None] == np.arange(SPc)[None, :]).astype(np.float32)
    ppool /= float((H // SP) * (W // SP))                        # (HW, 16)
    ups = (cell[None, :] == np.arange(SPc)[:, None]).astype(np.float32)   # (16, HW)
    pbig = np.tile(ppool, (1, Cout))                             # (HW, Cfull)
    ubig = np.tile(ups, (Cout, 1))                               # (Cfull, HW)
    dmask = (np.arange(Cfull)[None, :] // SPc ==
             np.arange(Cout)[:, None]).astype(np.float32)        # (Cout, Cfull)

    # rearranged weights ---------------------------------------------------------
    # block-diagonal conv weight: rows 0..Cout-1 read the f-taps, rows Cout.. the s-taps
    w1t = params["conv1_w"].transpose(2, 3, 1, 0).reshape(K2, Cin, Cout)
    w2t = params["conv2_w"].transpose(2, 3, 1, 0).reshape(K2, Cin, Cout)
    zer = jnp.zeros_like(w1t)
    top = jnp.concatenate([w1t, zer], axis=1).reshape(K2 * 2 * Cin, Cout).T
    bot = jnp.concatenate([zer, w2t], axis=1).reshape(K2 * 2 * Cin, Cout).T
    wbig = jnp.concatenate([top, bot], axis=0)                   # (2*Cout, 18*Cin)
    bb = jnp.concatenate([params["conv1_b"], params["conv2_b"]]).reshape(2 * Cout, 1)
    wfc = params["fc_w"].T                                       # (Cfull, hidden)
    watt = jnp.concatenate([params["att1_w"].T, params["att2_w"].T], axis=1)  # (hidden, 2*Cfull)
    batt = jnp.concatenate([params["att1_b"], params["att2_b"]]).reshape(1, 2 * Cfull)

    kern = functools.partial(skconv_kernel, H=H, W=W, Cin=Cin, Cout=Cout,
                             padl=PADL, apply_norm=not first)

    def cspec(shape):
        z = (0,) * len(shape)
        return pl.BlockSpec(shape, lambda b, _z=z: _z)

    out = pl.pallas_call(
        kern,
        grid=(B,),
        in_specs=[
            pl.BlockSpec((1, Cin, HW), lambda b: (b, 0, 0)),
            cspec((Cin, 1)), cspec((Cin, 1)),
            pl.BlockSpec((1, Cin, 1), lambda b: (b, 0, 0)),
            pl.BlockSpec((1, Cin, 1), lambda b: (b, 0, 0)),
            cspec((2, HW)),
            cspec((2 * Cout, 2 * K2 * Cin)), cspec((2 * Cout, 1)),
            cspec((HW, Cfull)), cspec((Cout, Cfull)),
            cspec((Cfull, hidden)), cspec((hidden, 2 * Cfull)), cspec((1, 2 * Cfull)),
            cspec((Cfull, HW)),
        ],
        out_specs=pl.BlockSpec((1, Cout, HW), lambda b: (b, 0, 0)),
        out_shape=jax.ShapeDtypeStruct((B, Cout, HW), jnp.float32),
        scratch_shapes=[pltpu.VMEM((2 * Cin, HWP), jnp.float32),          # padded [f;s]
                        pltpu.VMEM((2 * K2 * Cin, HW), jnp.float32)],     # tap stack
        compiler_params=pltpu.CompilerParams(
            dimension_semantics=("parallel",),
            vmem_limit_bytes=32 * 1024 * 1024),
    )(x_flat, bn_scale, bn_bias, in_scale, in_bias,
      jnp.asarray(colmask), wbig, bb,
      jnp.asarray(pbig), jnp.asarray(dmask), wfc, watt, batt, jnp.asarray(ubig))

    return out.reshape(B, Cout, H, W)


# ------------------------- pure-JAX reference ------------------------------

def reference(x, params):
    B, Cin, H, W = x.shape
    hp = lax.Precision.HIGHEST
    mu_b = x.mean(axis=(0, 2, 3), keepdims=True)
    var_b = ((x - mu_b) ** 2).mean(axis=(0, 2, 3), keepdims=True)
    f = (x - mu_b) / jnp.sqrt(var_b + EPS)
    f = jnp.where(f >= 0, f, NEG_SLOPE * f)
    mu_i = x.mean(axis=(2, 3), keepdims=True)
    var_i = ((x - mu_i) ** 2).mean(axis=(2, 3), keepdims=True)
    s = (x - mu_i) / jnp.sqrt(var_i + EPS)
    s = jnp.where(s >= 0, s, NEG_SLOPE * s)

    def conv(inp, w, b):
        y = lax.conv_general_dilated(inp, w, (1, 1), [(PAD, PAD), (PAD, PAD)],
                                     dimension_numbers=("NCHW", "OIHW", "NCHW"),
                                     precision=hp)
        return y + b[None, :, None, None]

    out1 = conv(f, params["conv1_w"], params["conv1_b"])
    out2 = conv(s, params["conv2_w"], params["conv2_b"])
    out = out1 + out2
    Cout = out.shape[1]
    pooled = out.reshape(B, Cout, SP, H // SP, SP, W // SP).mean(axis=(3, 5))
    y = pooled.reshape(B, -1)
    h = jnp.maximum(jnp.dot(y, params["fc_w"].T, precision=hp), 0.0)
    a1 = jnp.dot(h, params["att1_w"].T, precision=hp) + params["att1_b"]
    a2 = jnp.dot(h, params["att2_w"].T, precision=hp) + params["att2_b"]
    sm = jax.nn.softmax(jnp.stack([a1, a2]), axis=0)
    att1 = sm[0].reshape(B, Cout, SP, SP)
    att2 = sm[1].reshape(B, Cout, SP, SP)
    att1 = jnp.repeat(jnp.repeat(att1, H // SP, axis=2), W // SP, axis=3)
    att2 = jnp.repeat(jnp.repeat(att2, H // SP, axis=2), W // SP, axis=3)
    return out1 * att1 + out2 * att2


# --------------------------------- main -------------------------------------

if __name__ == "__main__":
    B, Cin, Cout, H, W = 2, 4, 8, 16, 16
    reduction = 16
    Cfull = Cout * SP * SP           # 128
    hidden = Cfull // reduction      # 8

    key = jax.random.PRNGKey(0)
    ks = jax.random.split(key, 10)
    x = jax.random.normal(ks[0], (B, Cin, H, W), jnp.float32)

    params = dict(
        conv1_w=0.1 * jax.random.normal(ks[1], (Cout, Cin, K_SIZE, K_SIZE), jnp.float32),
        conv1_b=0.1 * jax.random.normal(ks[2], (Cout,), jnp.float32),
        conv2_w=0.1 * jax.random.normal(ks[3], (Cout, Cin, K_SIZE, K_SIZE), jnp.float32),
        conv2_b=0.1 * jax.random.normal(ks[4], (Cout,), jnp.float32),
        fc_w=0.1 * jax.random.normal(ks[5], (hidden, Cfull), jnp.float32),
        att1_w=0.1 * jax.random.normal(ks[6], (Cfull, hidden), jnp.float32),
        att1_b=0.05 * jax.random.normal(ks[7], (Cfull,), jnp.float32),
        att2_w=0.1 * jax.random.normal(ks[8], (Cfull, hidden), jnp.float32),
        att2_b=0.05 * jax.random.normal(ks[9], (Cfull,), jnp.float32),
    )

    out = jax.block_until_ready(sk_down_forward(x, params, first=False))
    ref = jax.block_until_ready(reference(x, params))
    np.testing.assert_allclose(np.asarray(out), np.asarray(ref),
                               rtol=1e-2, atol=1e-2)
    print("KERNEL_OK")
</pallas_src>

<mosaic_0001>
module attributes {stable_mosaic.version = 11 : i64} {
  func.func @stats_kernel(%arg0: i32, %arg1: memref<8x256xf32, #tpu.memory_space<vmem>>, %arg2: memref<8x1xf32, #tpu.memory_space<vmem>>, %arg3: memref<8x1xf32, #tpu.memory_space<vmem>>) attributes {dimension_semantics = [#tpu.dimension_semantics<parallel>], iteration_bounds = array<i64: 1>, scalar_prefetch = 0 : i64, scratch_operands = 0 : i64, tpu.core_type = #tpu.core_type<tc>, window_params = [{transform_indices = @transform_0, window_bounds = array<i64: 8, 256>}, {transform_indices = @transform_1, window_bounds = array<i64: 8, 1>}, {transform_indices = @transform_2, window_bounds = array<i64: 8, 1>}]} {
    %c0 = arith.constant 0 : index
    %c0_0 = arith.constant 0 : index
    %0 = vector.load %arg1[%c0, %c0_0] : memref<8x256xf32, #tpu.memory_space<vmem>>, vector<8x256xf32>
    %cst = arith.constant dense<0.000000e+00> : vector<8xf32>
    %1 = vector.multi_reduction <add>, %0, %cst [1] : vector<8x256xf32> to vector<8xf32>
    %2 = vector.shape_cast %1 : vector<8xf32> to vector<8x1xf32>
    %cst_1 = arith.constant 2.560000e+02 : f32
    %3 = vector.broadcast %cst_1 : f32 to vector<8x1xf32>
    %4 = arith.divf %2, %3 : vector<8x1xf32>
    %c0_2 = arith.constant 0 : index
    %c0_3 = arith.constant 0 : index
    %5 = vector.load %arg2[%c0_2, %c0_3] : memref<8x1xf32, #tpu.memory_space<vmem>>, vector<8x1xf32>
    tpu.vector_store %arg2[%c0_2, %c0_3], %4 {strides = array<i32>} : memref<8x1xf32, #tpu.memory_space<vmem>>, vector<8x1xf32>,
    %6 = arith.mulf %0, %0 : vector<8x256xf32>
    %cst_4 = arith.constant dense<0.000000e+00> : vector<8xf32>
    %7 = vector.multi_reduction <add>, %6, %cst_4 [1] : vector<8x256xf32> to vector<8xf32>
    %8 = vector.shape_cast %7 : vector<8xf32> to vector<8x1xf32>
    %cst_5 = arith.constant 2.560000e+02 : f32
    %9 = vector.broadcast %cst_5 : f32 to vector<8x1xf32>
    %10 = arith.divf %8, %9 : vector<8x1xf32>
    %c0_6 = arith.constant 0 : index
    %c0_7 = arith.constant 0 : index
    %11 = vector.load %arg3[%c0_6, %c0_7] : memref<8x1xf32, #tpu.memory_space<vmem>>, vector<8x1xf32>
    tpu.vector_store %arg3[%c0_6, %c0_7], %10 {strides = array<i32>} : memref<8x1xf32, #tpu.memory_space<vmem>>, vector<8x1xf32>,
    return
  }
  func.func @transform_0(%arg0: i32) -> (i32, i32) {
    %c0_i32 = arith.constant 0 : i32
    %c0_i32_0 = arith.constant 0 : i32
    return %arg0, %c0_i32 : i32, i32
  }
  func.func @transform_1(%arg0: i32) -> (i32, i32) {
    %c0_i32 = arith.constant 0 : i32
    %c0_i32_0 = arith.constant 0 : i32
    return %arg0, %c0_i32 : i32, i32
  }
  func.func @transform_2(%arg0: i32) -> (i32, i32) {
    %c0_i32 = arith.constant 0 : i32
    %c0_i32_0 = arith.constant 0 : i32
    return %arg0, %c0_i32 : i32, i32
  }
}

</mosaic_0001>

<llo_original>
// kernel: tpu_custom_call.1
$region0: #{tpu_custom_call.1}
  #allocation0 [shape = 'u32[]', space=smem, size = 0x4, offset = 0x4, fixed_abs, tag = 'smem constant byte address 0x4 - core index']
  #allocation1 [shape = 'u32[144,128]{1,0:T(1,128)}', space=vmem, size = 0x12000, scoped, tag = 'internal scratch']
  %s0 = inlined_call_operand.hbm [shape: f32[8,256], index: 0, kind: input, shape index: {}]
  %s1 = inlined_call_operand.vmem [shape: f32[8,1], index: 1, kind: output, shape index: {0}]
  %s2 = inlined_call_operand.vmem [shape: f32[8,1], index: 2, kind: output, shape index: {1}]
  %3 = xla_tuple %s1, %s2
  %s4 = sld [smem:[#allocation0]]
  $region26: #{tpu_custom_call.1} parent=0
    _
  %s6 = ssub.s32 1, %s4
  %s7 = scalar_select 0, %s6, %s4
  $region1: #{tpu_custom_call.1} parent=0
    #allocation2 [shape = 'u8[8192]{0}', space=vmem, size = 0x2000, scoped, tag = 'input window, operand 0, single buffered']
    #allocation3 [shape = 's32[1]{0}', space=sflag, size = 0x4, scoped, tag = 'scoped memory for tpu_custom_call.1']
    %8 = vsyncpa [#allocation3], 0
    // Predicated region
    $region2: #{tpu_custom_call.1} parent=1 // pred_check
      _
    $region3: #{tpu_custom_call.1} parent=1 // pred_check_branch
      %10 = sbr.rel (0) target = $region5
    $region4: #{tpu_custom_call.1} parent=1 // pred_region
      %s12 = ssub.s32 256, 256
      %13 = vsyncadd [#allocation3], %s12
      %s15 = sshll.u32 [#allocation2], 4
      %s16 = int_to_ptr.vmem [resolvable:$true] %s15
      %18 = dma.hbm_to_vmem [thread:$0]  %s0, 256, %s16, [#allocation3]
    $region5: #{tpu_custom_call.1} parent=1 // pred_fallthru
      _
    // Predicated region
    $region6: #{tpu_custom_call.1} parent=1 // pred_check
      _
    $region7: #{tpu_custom_call.1} parent=1 // pred_check_branch
      %20 = sbr.rel (0) target = $region9
    $region8: #{tpu_custom_call.1} parent=1 // pred_region
      %21 = dma.done [#allocation3], 256
    $region9: #{tpu_custom_call.1} parent=1 // pred_fallthru
      _
    %v22 = vld [vmem:[#allocation2] sm:$0xff]
    %v23 = vld [vmem:[#allocation2 + $0x8] sm:$0xff]
    %v24 = vadd.f32 %v22, %v23
    %25 = vadd.xlane.f32.xlu0 %v24
    %v26 = vpop.xlane.xlu0 %25
    %v27 = vrcp.pop 256.0
    %v28 = vmul.f32 %v26, %v27
    %vm29 = vcmask 7168
    %30 = vst.msk [vmem:[%s1] sm:$0xff] %vm29, %v28
    %v31 = vmul.f32 %v22, %v22
    %v32 = vmul.f32 %v23, %v23
    %v33 = vadd.f32 %v31, %v32
    %34 = vadd.xlane.f32.xlu0 %v33
    %v35 = vpop.xlane.xlu0 %34
    %v36 = vmul.f32 %v35, %v27
    %37 = vst.msk [vmem:[%s2] sm:$0xff] %vm29, %v36
    // Predicated region
    $region10: #{tpu_custom_call.1} parent=1 // pred_check
      _
    $region11: #{tpu_custom_call.1} parent=1 // pred_check_branch
      %39 = sbr.rel (0) target = $region13
    $region12: #{tpu_custom_call.1} parent=1 // pred_region
      _
    $region13: #{tpu_custom_call.1} parent=1 // pred_fallthru
      _
    // Predicated region
    $region14: #{tpu_custom_call.1} parent=1 // pred_check
      _
    $region15: #{tpu_custom_call.1} parent=1 // pred_check_branch
      %41 = sbr.rel (0) target = $region17
    $region16: #{tpu_custom_call.1} parent=1 // pred_region
      _
    $region17: #{tpu_custom_call.1} parent=1 // pred_fallthru
      _
    // Predicated region
    $region18: #{tpu_custom_call.1} parent=1 // pred_check
      _
    $region19: #{tpu_custom_call.1} parent=1 // pred_check_branch
      %43 = sbr.rel (0) target = $region21
    $region20: #{tpu_custom_call.1} parent=1 // pred_region
      _
    $region21: #{tpu_custom_call.1} parent=1 // pred_fallthru
      _
    // Predicated region
    $region22: #{tpu_custom_call.1} parent=1 // pred_check
      _
    $region23: #{tpu_custom_call.1} parent=1 // pred_check_branch
      %45 = sbr.rel (0) target = $region25
    $region24: #{tpu_custom_call.1} parent=1 // pred_region
      _
    $region25: #{tpu_custom_call.1} parent=1 // pred_fallthru
      _
    %46 = vsyncpa [#allocation3], 1

</llo_original>
